<compile_context>
chip_gen: v5e
topology: v5e:2x2
jax: 0.10.0
libtpu: 0.0.40
codegen_flags: <defaults>
</compile_context>

<pallas_src>
import jax
import jax.numpy as jnp
from jax.experimental import pallas as pl
from jax.experimental.pallas import tpu as pltpu


def _self_attention_kernel(w_ref, adj_ref, bias_ref, srow_ref, scol_ref, out_ref):
    # SMEM scalars: W[0] (source coeff) and W[D+1] (target coeff)
    w_src = w_ref[0]
    w_dst = w_ref[1]

    s_rows = srow_ref[...]                              # (tm, 1) scores of this row tile
    s_cols = scol_ref[...]                              # (1, N)  scores^T, full row

    # pairwise term W0*scores[src] + WL*scores[dst]
    pair = s_rows * w_src + s_cols * w_dst              # (tm, N)

    adj = adj_ref[...].astype(jnp.float32)              # (tm, N) edge counts (bf16 -> f32, exact)
    sum_att = adj * pair + bias_ref[...]                 # dense scatter-add result

    # LeakyReLU(negative_slope=0.2) as a single max
    act = jnp.maximum(sum_att, 0.2 * sum_att)

    # row softmax over the full N dim (rows are independent across row tiles)
    m = jnp.max(act, axis=-1, keepdims=True)
    e = jnp.exp(act - m)
    denom = jnp.sum(e, axis=-1, keepdims=True)
    # approx=True would move the divide fully to the EUP; kept exact to hold the 1e-4 check.
    att = e * pl.reciprocal(denom, approx=False)         # (tm, N)

    # att @ scores as VPU mul + cross-lane reduce (avoids a degenerate 1-column MXU matmul)
    out_ref[...] = jnp.sum(att * s_cols, axis=-1, keepdims=True)   # (tm, 1)


def self_attention_forward(adjs, scores, edge_type_emb, attention_weight, *, tm=64):
    N = scores.shape[0]
    D = edge_type_emb.shape[1]
    assert N % tm == 0, "row tile tm must divide N"

    # ---- hoisted, grid-invariant work (wrapper) --------------------------------
    # per-edge-type bias b_r = edge_type_emb[r] @ W[1:D+1]
    b = jnp.dot(edge_type_emb, attention_weight[1:D + 1, :])        # (R, 1)

    # densify + collapse the R axis in one pass over the edge lists
    adj_tot = jnp.zeros((N, N), dtype=jnp.float32)
    adj_bias = jnp.zeros((N, N), dtype=jnp.float32)
    for r, (src, tgt) in enumerate(adjs):
        adj_tot = adj_tot.at[src, tgt].add(1.0)
        adj_bias = adj_bias.at[src, tgt].add(b[r, 0])

    adj_tot_bf16 = adj_tot.astype(jnp.bfloat16)   # small integer counts: exact in bf16, halves HBM bytes
    w_scalars = jnp.array([attention_weight[0, 0], attention_weight[D + 1, 0]],
                          dtype=jnp.float32)      # -> SMEM
    scores_t = scores.reshape(1, N)               # lane-dense row view for column broadcast / reduce

    return pl.pallas_call(
        _self_attention_kernel,
        out_shape=jax.ShapeDtypeStruct((N, 1), jnp.float32),
        grid_spec=pltpu.PrefetchScalarGridSpec(
            num_scalar_prefetch=0,
            grid=(N // tm,),
            in_specs=[
                pl.BlockSpec(memory_space=pltpu.MemorySpace.SMEM),   # (2,) W scalars
                pl.BlockSpec((tm, N), lambda i: (i, 0)),             # adj_tot row tile (bf16)
                pl.BlockSpec((tm, N), lambda i: (i, 0)),             # adj_bias row tile (f32)
                pl.BlockSpec((tm, 1), lambda i: (i, 0)),             # scores row tile
                pl.BlockSpec((1, N), lambda i: (0, 0)),              # scores^T (full)
            ],
            out_specs=pl.BlockSpec((tm, 1), lambda i: (i, 0)),
        ),
        compiler_params=pltpu.CompilerParams(
            dimension_semantics=("parallel",)),
    )(w_scalars, adj_tot_bf16, adj_bias, scores, scores_t)


if __name__ == "__main__":
    N, R, D, E = 128, 4, 8, 200   # nodes, edge types (len(adjs)), edge_emb_dim, edges/type
    # tm=64 -> 2 grid steps: keeps both v7x TensorCores fed; for larger N pick the
    # largest tm whose double-buffered (tm, N) tiles fit the scoped VMEM budget.
    TM = 64

    key = jax.random.PRNGKey(0)
    k_scores, k_emb, k_w, k_edges = jax.random.split(key, 4)

    scores = jax.random.normal(k_scores, (N, 1), dtype=jnp.float32)
    edge_type_emb = jax.random.normal(k_emb, (R, D), dtype=jnp.float32)
    # xavier_normal_ for shape (D+2, 1): std = sqrt(2 / (fan_in + fan_out))
    std = (2.0 / (D + 2 + 1)) ** 0.5
    attention_weight = std * jax.random.normal(k_w, (D + 2, 1), dtype=jnp.float32)

    # deterministic synthetic adjs: R edge lists, unique (src, tgt) per type
    edge_keys = jax.random.split(k_edges, R)
    adjs = []
    for r in range(R):
        flat = jax.random.permutation(edge_keys[r], N * N)[:E]
        adjs.append((flat // N, flat % N))

    out = self_attention_forward(adjs, scores, edge_type_emb, attention_weight, tm=TM)
    out = jax.block_until_ready(out)

    # pure-JAX reference mirroring the PyTorch edge-list loop exactly
    sum_att = jnp.zeros((N, N), dtype=jnp.float32)
    for r, (src, tgt) in enumerate(adjs):
        rep = jnp.broadcast_to(edge_type_emb[r], (E, D))
        cat = jnp.concatenate([scores[src], rep, scores[tgt]], axis=-1)
        att_r = (cat @ attention_weight)[:, 0]
        sum_att = sum_att.at[src, tgt].add(att_r)
    act = jnp.where(sum_att > 0, sum_att, 0.2 * sum_att)
    att = jax.nn.softmax(act, axis=-1)
    ref = att @ scores

    assert out.shape == (N, 1)
    err = float(jnp.max(jnp.abs(out - ref)))
    assert jnp.allclose(out, ref, rtol=1e-4, atol=1e-4), f"max abs err = {err}"
    print("KERNEL_OK")
</pallas_src>

<mosaic_0001>
module attributes {stable_mosaic.version = 11 : i64} {
  func.func @_self_attention_kernel(%arg0: i32, %arg1: memref<2xf32, #tpu.memory_space<smem>>, %arg2: memref<64x128xbf16, #tpu.memory_space<vmem>>, %arg3: memref<64x128xf32, #tpu.memory_space<vmem>>, %arg4: memref<64x1xf32, #tpu.memory_space<vmem>>, %arg5: memref<1x128xf32, #tpu.memory_space<vmem>>, %arg6: memref<64x1xf32, #tpu.memory_space<vmem>>) attributes {dimension_semantics = [#tpu.dimension_semantics<parallel>], iteration_bounds = array<i64: 2>, scalar_prefetch = 0 : i64, scratch_operands = 0 : i64, tpu.core_type = #tpu.core_type<tc>, window_params = [{transform_indices = @transform_0, window_bounds = array<i64: 2>}, {transform_indices = @transform_1, window_bounds = array<i64: 64, 128>}, {transform_indices = @transform_2, window_bounds = array<i64: 64, 128>}, {transform_indices = @transform_3, window_bounds = array<i64: 64, 1>}, {pipeline_mode = #tpu.pipeline_mode<synchronous>, transform_indices = @transform_4, window_bounds = array<i64: 1, 128>}, {transform_indices = @transform_5, window_bounds = array<i64: 64, 1>}]} {
    %c0 = arith.constant 0 : index
    %0 = memref.load %arg1[%c0] : memref<2xf32, #tpu.memory_space<smem>>
    %c1 = arith.constant 1 : index
    %1 = memref.load %arg1[%c1] : memref<2xf32, #tpu.memory_space<smem>>
    %c0_0 = arith.constant 0 : index
    %c0_1 = arith.constant 0 : index
    %2 = vector.load %arg4[%c0_0, %c0_1] : memref<64x1xf32, #tpu.memory_space<vmem>>, vector<64x1xf32>
    %c0_2 = arith.constant 0 : index
    %c0_3 = arith.constant 0 : index
    %3 = vector.load %arg5[%c0_2, %c0_3] : memref<1x128xf32, #tpu.memory_space<vmem>>, vector<1x128xf32>
    %4 = vector.broadcast %0 : f32 to vector<64x1xf32>
    %5 = arith.mulf %2, %4 : vector<64x1xf32>
    %6 = vector.broadcast %1 : f32 to vector<1x128xf32>
    %7 = arith.mulf %3, %6 : vector<1x128xf32>
    %8 = vector.broadcast %5 : vector<64x1xf32> to vector<64x128xf32>
    %9 = vector.broadcast %7 : vector<1x128xf32> to vector<64x128xf32>
    %10 = arith.addf %8, %9 : vector<64x128xf32>
    %c0_4 = arith.constant 0 : index
    %c0_5 = arith.constant 0 : index
    %11 = vector.load %arg2[%c0_4, %c0_5] : memref<64x128xbf16, #tpu.memory_space<vmem>>, vector<64x128xbf16>
    %12 = arith.extf %11 : vector<64x128xbf16> to vector<64x128xf32>
    %13 = arith.mulf %12, %10 : vector<64x128xf32>
    %c0_6 = arith.constant 0 : index
    %c0_7 = arith.constant 0 : index
    %14 = vector.load %arg3[%c0_6, %c0_7] : memref<64x128xf32, #tpu.memory_space<vmem>>, vector<64x128xf32>
    %15 = arith.addf %13, %14 : vector<64x128xf32>
    %cst = arith.constant 2.000000e-01 : f32
    %16 = vector.broadcast %cst : f32 to vector<64x128xf32>
    %17 = arith.mulf %16, %15 : vector<64x128xf32>
    %18 = arith.maximumf %15, %17 : vector<64x128xf32>
    %cst_8 = arith.constant dense<0xFF800000> : vector<64xf32>
    %19 = vector.multi_reduction <maximumf>, %18, %cst_8 [1] : vector<64x128xf32> to vector<64xf32>
    %20 = vector.shape_cast %19 : vector<64xf32> to vector<64x1xf32>
    %21 = vector.broadcast %20 : vector<64x1xf32> to vector<64x128xf32>
    %22 = arith.subf %18, %21 : vector<64x128xf32>
    %23 = math.exp %22 : vector<64x128xf32>
    %cst_9 = arith.constant dense<0.000000e+00> : vector<64xf32>
    %24 = vector.multi_reduction <add>, %23, %cst_9 [1] : vector<64x128xf32> to vector<64xf32>
    %25 = vector.shape_cast %24 : vector<64xf32> to vector<64x1xf32>
    %26 = tpu.reciprocal %25 : vector<64x1xf32> -> vector<64x1xf32>
    %27 = vector.broadcast %26 : vector<64x1xf32> to vector<64x128xf32>
    %28 = arith.mulf %23, %27 : vector<64x128xf32>
    %29 = vector.broadcast %3 : vector<1x128xf32> to vector<64x128xf32>
    %30 = arith.mulf %28, %29 : vector<64x128xf32>
    %cst_10 = arith.constant dense<0.000000e+00> : vector<64xf32>
    %31 = vector.multi_reduction <add>, %30, %cst_10 [1] : vector<64x128xf32> to vector<64xf32>
    %32 = vector.shape_cast %31 : vector<64xf32> to vector<64x1xf32>
    %c0_11 = arith.constant 0 : index
    %c0_12 = arith.constant 0 : index
    %33 = vector.load %arg6[%c0_11, %c0_12] : memref<64x1xf32, #tpu.memory_space<vmem>>, vector<64x1xf32>
    tpu.vector_store %arg6[%c0_11, %c0_12], %32 {strides = array<i32>} : memref<64x1xf32, #tpu.memory_space<vmem>>, vector<64x1xf32>,
    return
  }
  func.func @transform_0(%arg0: i32) -> i32 {
    %c0_i32 = arith.constant 0 : i32
    %c0_i32_0 = arith.constant 0 : i32
    return %c0_i32 : i32
  }
  func.func @transform_1(%arg0: i32) -> (i32, i32) {
    %c0_i32 = arith.constant 0 : i32
    %c0_i32_0 = arith.constant 0 : i32
    return %arg0, %c0_i32 : i32, i32
  }
  func.func @transform_2(%arg0: i32) -> (i32, i32) {
    %c0_i32 = arith.constant 0 : i32
    %c0_i32_0 = arith.constant 0 : i32
    return %arg0, %c0_i32 : i32, i32
  }
  func.func @transform_3(%arg0: i32) -> (i32, i32) {
    %c0_i32 = arith.constant 0 : i32
    %c0_i32_0 = arith.constant 0 : i32
    return %arg0, %c0_i32 : i32, i32
  }
  func.func @transform_4(%arg0: i32) -> (i32, i32) {
    %c0_i32 = arith.constant 0 : i32
    %c0_i32_0 = arith.constant 0 : i32
    %c0_i32_1 = arith.constant 0 : i32
    return %c0_i32, %c0_i32_0 : i32, i32
  }
  func.func @transform_5(%arg0: i32) -> (i32, i32) {
    %c0_i32 = arith.constant 0 : i32
    %c0_i32_0 = arith.constant 0 : i32
    return %arg0, %c0_i32 : i32, i32
  }
}

</mosaic_0001>

<llo_original>
// kernel: tpu_custom_call.1
$region0: #{tpu_custom_call.1}
  #allocation0 [shape = 'u32[]', space=smem, size = 0x4, offset = 0x4, fixed_abs, tag = 'smem constant byte address 0x4 - core index']
  #allocation1 [shape = 'u32[72,128]{1,0:T(1,128)}', space=vmem, size = 0x9000, scoped, tag = 'internal scratch']
  %s0 = inlined_call_operand.vmem [shape: f32[2], index: 0, kind: input, shape index: {}]
  %s1 = inlined_call_operand.hbm [shape: bf16[128,128], index: 1, kind: input, shape index: {}]
  %s2 = inlined_call_operand.vmem [shape: f32[128,128], index: 2, kind: input, shape index: {}]
  %s3 = inlined_call_operand.vmem [shape: f32[128,1], index: 3, kind: input, shape index: {}]
  %s4 = inlined_call_operand.vmem [shape: f32[1,128], index: 4, kind: input, shape index: {}]
  %s5 = inlined_call_operand.vmem [shape: f32[128,1], index: 5, kind: output, shape index: {}]
  %s6 = sld [smem:[#allocation0]]
  $region61: #{tpu_custom_call.1} parent=0
    _
  %s8 = ssub.s32 1, %s6
  %s9 = scalar_select 0, %s8, %s6
  $region1: #{tpu_custom_call.1} parent=0
    #allocation2 [shape = 'u8[512]{0}', space=smem, size = 0x200, scoped, tag = 'input window, operand 0, single buffered']
    #allocation3 [shape = 's32[2]{0}', space=sflag, size = 0x8, scoped, tag = 'scoped memory for tpu_custom_call.1']
    #allocation4 [shape = 's32[2]{0}', space=sflag, size = 0x8, scoped, tag = 'scoped memory for tpu_custom_call.1']
    #allocation5 [shape = 'u8[32768]{0}', space=vmem, size = 0x8000, scoped, tag = 'input window, operand 1']
    %10 = vsyncpa [#allocation4], 0
    %11 = vsyncpa [#allocation3], 0
    %s12 = scalar_lea.sflag [#allocation3], 1
    %13 = vsyncpa %s12, 0
    loop: start=0, step=1, limit=4
    $region2: #{tpu_custom_call.1} parent=1 // loop_pre_header
      _
    $region3: #{tpu_custom_call.1} parent=1 // loop_header
      %s15 = sphi 0, %s19
      %p16 = scmp.ge.s32.totalorder %s15, 4
      %s23 = sphi 0, %s23
      %s25 = sphi 0, %s23
      %s26 = sphi 0, %s25
      %s40 = sphi 0, %s26
      %s46 = sphi 0, %s48
      %s49 = sphi 0, %s46
      %s50 = sphi 0, %s49
      %s66 = sphi 0, %s50
      %s72 = sphi 0, %s74
      %s75 = sphi 0, %s72
      %s76 = sphi 0, %s75
      %s92 = sphi 0, %s76
      %s98 = sphi 0, %s100
      %s101 = sphi 0, %s98
      %s102 = sphi 0, %s101
      %s118 = sphi 0, %s102
      %s122 = sphi 0, %s122
      %s124 = sphi 0, %s122
      %s125 = sphi 0, %s124
      %s139 = sphi 0, %s125
      %s145 = sphi 0, %s147
      %s148 = sphi 0, %s145
      %s149 = sphi 0, %s148
      %s165 = sphi 0, %s149
    $region4: #{tpu_custom_call.1} parent=1 // loop_header_branch
      %18 = sbr.rel (%p16) target = $region8
    $region5: #{tpu_custom_call.1} parent=1 // loop_body
      %s20 = ssub.s32 %s15, 1
      %s21 = ssub.s32 %s15, 2
      %s22 = sadd.s32 %s15, 1
      %s24 = sadd.s32 %s23, 1
      %p27 = scmp.eq.s32.totalorder %s15, 1
      %p28 = scmp.ne.s32.totalorder %s23, %s25
      %p29 = scmp.eq.s32.totalorder %s15, 0
      %p30 = por %p28, %p29
      %p31 = scmp.ne.s32.totalorder %s23, %s25
      %p32 = scmp.eq.s32.totalorder %s20, 1
      %p33 = por %p31, %p32
      %p34 = scmp.ne.s32.totalorder %s25, %s26
      %p35 = scmp.eq.s32.totalorder %s20, 0
      %p36 = por %p34, %p35
      %p37 = scmp.ne.s32.totalorder %s25, %s26
      %p38 = scmp.eq.s32.totalorder %s21, 1
      %p39 = por %p37, %p38
      %p41 = scmp.ne.s32.totalorder %s26, %s40
      %p42 = scmp.eq.s32.totalorder %s21, 0
      %p43 = por %p41, %p42
      %s44 = ssub.s32 %s15, %s22
      %p45 = scmp.eq.s32.totalorder %s44, 0
      %s47 = sadd.s32 %s46, 1
      %s48 = scalar_select %p45, %s46, %s47
      %p51 = pneg %p45
      %p52 = scmp.eq.s32.totalorder %s15, 1
      %p53 = por %p51, %p52
      %p54 = scmp.ne.s32.totalorder %s46, %s49
      %p55 = scmp.eq.s32.totalorder %s15, 0
      %p56 = por %p54, %p55
      %p57 = scmp.ne.s32.totalorder %s46, %s49
      %p58 = scmp.eq.s32.totalorder %s20, 1
      %p59 = por %p57, %p58
      %p60 = scmp.ne.s32.totalorder %s49, %s50
      %p61 = scmp.eq.s32.totalorder %s20, 0
      %p62 = por %p60, %p61
      %p63 = scmp.ne.s32.totalorder %s49, %s50
      %p64 = scmp.eq.s32.totalorder %s21, 1
      %p65 = por %p63, %p64
      %p67 = scmp.ne.s32.totalorder %s50, %s66
      %p68 = scmp.eq.s32.totalorder %s21, 0
      %p69 = por %p67, %p68
      %s70 = ssub.s32 %s15, %s22
      %p71 = scmp.eq.s32.totalorder %s70, 0
      %s73 = sadd.s32 %s72, 1
      %s74 = scalar_select %p71, %s72, %s73
      %p77 = pneg %p71
      %p78 = scmp.eq.s32.totalorder %s15, 1
      %p79 = por %p77, %p78
      %p80 = scmp.ne.s32.totalorder %s72, %s75
      %p81 = scmp.eq.s32.totalorder %s15, 0
      %p82 = por %p80, %p81
      %p83 = scmp.ne.s32.totalorder %s72, %s75
      %p84 = scmp.eq.s32.totalorder %s20, 1
      %p85 = por %p83, %p84
      %p86 = scmp.ne.s32.totalorder %s75, %s76
      %p87 = scmp.eq.s32.totalorder %s20, 0
      %p88 = por %p86, %p87
      %p89 = scmp.ne.s32.totalorder %s75, %s76
      %p90 = scmp.eq.s32.totalorder %s21, 1
      %p91 = por %p89, %p90
      %p93 = scmp.ne.s32.totalorder %s76, %s92
      %p94 = scmp.eq.s32.totalorder %s21, 0
      %p95 = por %p93, %p94
      %s96 = ssub.s32 %s15, %s22
      %p97 = scmp.eq.s32.totalorder %s96, 0
      %s99 = sadd.s32 %s98, 1
      %s100 = scalar_select %p97, %s98, %s99
      %p103 = pneg %p97
      %p104 = scmp.eq.s32.totalorder %s15, 1
      %p105 = por %p103, %p104
      %p106 = scmp.ne.s32.totalorder %s98, %s101
      %p107 = scmp.eq.s32.totalorder %s15, 0
      %p108 = por %p106, %p107
      %p109 = scmp.ne.s32.totalorder %s98, %s101
      %p110 = scmp.eq.s32.totalorder %s20, 1
      %p111 = por %p109, %p110
      %p112 = scmp.ne.s32.totalorder %s101, %s102
      %p113 = scmp.eq.s32.totalorder %s20, 0
      %p114 = por %p112, %p113
      %p115 = scmp.ne.s32.totalorder %s101, %s102
      %p116 = scmp.eq.s32.totalorder %s21, 1
      %p117 = por %p115, %p116
      %p119 = scmp.ne.s32.totalorder %s102, %s118
      %p120 = scmp.eq.s32.totalorder %s21, 0
      %p121 = por %p119, %p120
      %s123 = sadd.s32 %s122, 1
      %p126 = scmp.eq.s32.totalorder %s15, 1
      %p127 = scmp.ne.s32.totalorder %s122, %s124
      %p128 = scmp.eq.s32.totalorder %s15, 0
      %p129 = por %p127, %p128
      %p130 = scmp.ne.s32.totalorder %s122, %s124
      %p131 = scmp.eq.s32.totalorder %s20, 1
      %p132 = por %p130, %p131
      %p133 = scmp.ne.s32.totalorder %s124, %s125
      %p134 = scmp.eq.s32.totalorder %s20, 0
      %p135 = por %p133, %p134
      %p136 = scmp.ne.s32.totalorder %s124, %s125
      %p137 = scmp.eq.s32.totalorder %s21, 1
      %p138 = por %p136, %p137
      %p140 = scmp.ne.s32.totalorder %s125, %s139
      %p141 = scmp.eq.s32.totalorder %s21, 0
      %p142 = por %p140, %p141
      %s143 = ssub.s32 %s15, %s22
      %p144 = scmp.eq.s32.totalorder %s143, 0
      %s146 = sadd.s32 %s145, 1
      %s147 = scalar_select %p144, %s145, %s146
      %p150 = pneg %p144
      %p151 = scmp.eq.s32.totalorder %s15, 1
      %p152 = por %p150, %p151
      %p153 = scmp.ne.s32.totalorder %s145, %s148
      %p154 = scmp.eq.s32.totalorder %s15, 0
      %p155 = por %p153, %p154
      %p156 = scmp.ne.s32.totalorder %s145, %s148
      %p157 = scmp.eq.s32.totalorder %s20, 1
      %p158 = por %p156, %p157
      %p159 = scmp.ne.s32.totalorder %s148, %s149
      %p160 = scmp.eq.s32.totalorder %s20, 0
      %p161 = por %p159, %p160
      %p162 = scmp.ne.s32.totalorder %s148, %s149
      %p163 = scmp.eq.s32.totalorder %s21, 1
      %p164 = por %p162, %p163
      %p166 = scmp.ne.s32.totalorder %s149, %s165
      %p167 = scmp.eq.s32.totalorder %s21, 0
      %p168 = por %p166, %p167
      %p169 = scmp.le.s32.totalorder 1, %s15
      %p170 = scmp.lt.s32.totalorder %s15, 3
      %p171 = pnand %p169, %p170
      %p172 = pneg %p171
      // Predicated region
      $region9: #{tpu_custom_call.1} parent=5 // pred_check
        _
      $region10: #{tpu_custom_call.1} parent=5 // pred_check_branch
        %174 = sbr.rel (%p171) target = $region12
      $region11: #{tpu_custom_call.1} parent=5 // pred_region
        %s175 = ssub.s32 %s15, 1
        // Predicated region
        $region13: #{tpu_custom_call.1} parent=11 // pred_check
          %p176 = pneg %p36
        $region14: #{tpu_custom_call.1} parent=11 // pred_check_branch
          %178 = sbr.rel (%p176) target = $region16
        $region15: #{tpu_custom_call.1} parent=11 // pred_region
          %180 = vsyncadd [#allocation4], 0
          %s182 = sshll.u32 %s0, 4
          %s183 = int_to_ptr.vmem [resolvable:$true] %s182
          %185 = dma.vmem_to_smem %s183, 16, [#allocation2], [#allocation4]
        $region16: #{tpu_custom_call.1} parent=11 // pred_fallthru
          _
        // Predicated region
        $region17: #{tpu_custom_call.1} parent=11 // pred_check
          %p186 = pneg %p135
        $region18: #{tpu_custom_call.1} parent=11 // pred_check_branch
          %188 = sbr.rel (%p186) target = $region20
        $region19: #{tpu_custom_call.1} parent=11 // pred_region
          _
        $region20: #{tpu_custom_call.1} parent=11 // pred_fallthru
          _
      $region12: #{tpu_custom_call.1} parent=5 // pred_fallthru
        _
      %p189 = scmp.lt.s32.totalorder %s15, 2
      // Predicated region
      $region21: #{tpu_custom_call.1} parent=5 // pred_check
        %p190 = pneg %p189
      $region22: #{tpu_custom_call.1} parent=5 // pred_check_branch
        %192 = sbr.rel (%p190) target = $region24
      $region23: #{tpu_custom_call.1} parent=5 // pred_region
        // Predicated region
        $region25: #{tpu_custom_call.1} parent=23 // pred_check
          %p193 = pneg %p56
        $region26: #{tpu_custom_call.1} parent=23 // pred_check_branch
          %195 = sbr.rel (%p193) target = $region28
        $region27: #{tpu_custom_call.1} parent=23 // pred_region
          %s196 = sand.u32 %s46, 1
          %s197 = scalar_lea.sflag [#allocation3], %s196
          %s198 = sand.u32 %s46, 1
          %s199 = smul.addr %s198, 32
          %s200 = scalar_lea.vmem [#allocation5], %s199
          %s201 = smul.u32 8, %s15
          %203 = vsyncadd %s197, 0
          %s204 = smul.addr %s201, 4
          %s205 = scalar_lea.hbm %s1, %s204
          %s206 = sshll.u32 %s205, 4
          %s207 = int_to_ptr.hbm [resolvable:$true] %s206
          %s208 = sshll.u32 %s200, 4
          %s209 = int_to_ptr.vmem [resolvable:$true] %s208
          %214 = dma.hbm_to_vmem [thread:$0]  %s207, 512, %s209, %s197, 64, 64, 4
        $region28: #{tpu_custom_call.1} parent=23 // pred_fallthru
          _
        // Predicated region
        $region29: #{tpu_custom_call.1} parent=23 // pred_check
          %p215 = pneg %p82
        $region30: #{tpu_custom_call.1} parent=23 // pred_check_branch
          %217 = sbr.rel (%p215) target = $region32
        $region31: #{tpu_custom_call.1} parent=23 // pred_region
          %s218 = smul.u32 8, %s15
          %p219 = scmp.lt.s32.totalorder %s218, 15
          %s220 = scalar_select %p219, %s218, 15
          %s221 = smul.addr %s220, 8
          %s222 = scalar_lea.vmem %s2, %s221
          %s223 = smul.u32 8, %s15
        $region32: #{tpu_custom_call.1} parent=23 // pred_fallthru
          _
        // Predicated region
        $region33: #{tpu_custom_call.1} parent=23 // pred_check
          %p224 = pneg %p108
        $region34: #{tpu_custom_call.1} parent=23 // pred_check_branch
          %226 = sbr.rel (%p224) target = $region36
        $region35: #{tpu_custom_call.1} parent=23 // pred_region
          %s227 = smul.u32 8, %s15
          %p228 = scmp.lt.s32.totalorder %s227, 15
          %s229 = scalar_select %p228, %s227, 15
          %s230 = smul.addr %s229, 8
          %s231 = scalar_lea.vmem %s3, %s230
          %s232 = smul.u32 8, %s15
        $region36: #{tpu_custom_call.1} parent=23 // pred_fallthru
          _
      $region24: #{tpu_custom_call.1} parent=5 // pred_fallthru
        _
      %p233 = scmp.le.s32.totalorder 1, %s15
      %p234 = scmp.lt.s32.totalorder %s15, 3
      %p235 = pnand %p233, %p234
      %p236 = pneg %p235
      // Predicated region
      $region37: #{tpu_custom_call.1} parent=5 // pred_check
        _
      $region38: #{tpu_custom_call.1} parent=5 // pred_check_branch
        %238 = sbr.rel (%p235) target = $region40
      $region39: #{tpu_custom_call.1} parent=5 // pred_region
        %s239 = ssub.s32 %s15, 1
        // Predicated region
        $region41: #{tpu_custom_call.1} parent=39 // pred_check
          %p240 = pneg %p36
        $region42: #{tpu_custom_call.1} parent=39 // pred_check_branch
          %242 = sbr.rel (%p240) target = $region44
        $region43: #{tpu_custom_call.1} parent=39 // pred_region
          %244 = dma.done [#allocation4], 16
        $region44: #{tpu_custom_call.1} parent=39 // pred_fallthru
          _
        %s245 = sand.u32 %s49, 1
        %s246 = scalar_lea.sflag [#allocation3], %s245
        %s247 = sand.u32 %s49, 1
        %s248 = smul.addr %s247, 32
        %s249 = scalar_lea.vmem [#allocation5], %s248
        // Predicated region
        $region45: #{tpu_custom_call.1} parent=39 // pred_check
          %p250 = pneg %p62
        $region46: #{tpu_custom_call.1} parent=39 // pred_check_branch
          %252 = sbr.rel (%p250) target = $region48
        $region47: #{tpu_custom_call.1} parent=39 // pred_region
          %254 = dma.done %s246, 512
        $region48: #{tpu_custom_call.1} parent=39 // pred_fallthru
          _
        %255 = sfence
        %p256 = pneg %p36
        %p257 = pneg %p33
        %s258 = sand.u32 %s49, 1
        %s259 = scalar_lea.sflag [#allocation3], %s258
        %s260 = sand.u32 %s49, 1
        %s261 = smul.addr %s260, 32
        %s262 = scalar_lea.vmem [#allocation5], %s261
        %p263 = pneg %p62
        %p264 = pneg %p59
        %s265 = smul.u32 8, %s20
        %p266 = scmp.lt.s32.totalorder %s265, 15
        %s267 = scalar_select %p266, %s265, 15
        %s268 = smul.addr %s267, 8
        %s269 = scalar_lea.vmem %s2, %s268
        %p270 = pneg %p88
        %p271 = pneg %p85
        %s272 = smul.u32 8, %s20
        %p273 = scmp.lt.s32.totalorder %s272, 15
        %s274 = scalar_select %p273, %s272, 15
        %s275 = smul.addr %s274, 8
        %s276 = scalar_lea.vmem %s3, %s275
        %p277 = pneg %p114
        %p278 = pneg %p111
        %p279 = pneg %p135
        %p280 = pneg %p132
        %p281 = pneg %p161
        %p282 = pneg %p158
        %s283 = smul.u32 8, %s20
        %p284 = scmp.lt.s32.totalorder %s283, 15
        %s285 = scalar_select %p284, %s283, 15
        %s286 = smul.addr %s285, 8
        %s287 = scalar_lea.vmem %s5, %s286
        %s288 = smul.u32 8, %s20
        %s289 = smul.u32 8, %s20
        %p290 = scmp.lt.s32.totalorder %s289, 15
        %s291 = scalar_select %p290, %s289, 15
        %s292 = smul.addr %s291, 8
        %s293 = scalar_lea.vmem %s2, %s292
        %s294 = smul.u32 8, %s20
        %s295 = smul.u32 8, %s20
        %p296 = scmp.lt.s32.totalorder %s295, 15
        %s297 = scalar_select %p296, %s295, 15
        %s298 = smul.addr %s297, 8
        %s299 = scalar_lea.vmem %s3, %s298
        %s300 = smul.u32 8, %s20
        %s301 = smul.u32 8, %s20
        %p302 = scmp.lt.s32.totalorder %s301, 15
        %s303 = scalar_select %p302, %s301, 15
        %s304 = smul.addr %s303, 8
        %s305 = scalar_lea.vmem %s5, %s304
        %s306 = smul.u32 8, %s20
        %s307 = sld [smem:[#allocation2]]
        %s308 = sld [smem:[#allocation2 + $0x1]]
        %v309 = vld [vmem:[%s299] sm:$0xff]
        %v310 = vld [vmem:[%s299 + $0x8] sm:$0xff]
        %v311 = vld [vmem:[%s299 + $0x10] sm:$0xff]
        %v312 = vld [vmem:[%s299 + $0x18] sm:$0xff]
        %v313 = vld [vmem:[%s299 + $0x20] sm:$0xff]
        %v314 = vld [vmem:[%s299 + $0x28] sm:$0xff]
        %v315 = vld [vmem:[%s299 + $0x30] sm:$0xff]
        %v316 = vld [vmem:[%s299 + $0x38] sm:$0xff]
        %v317 = vld [vmem:[%s4] sm:$0x1]
        %v318 = vstv %s307
        %v319 = vmul.f32 %v309, %v318
        %v320 = vmul.f32 %v310, %v318
        %v321 = vmul.f32 %v311, %v318
        %v322 = vmul.f32 %v312, %v318
        %v323 = vmul.f32 %v313, %v318
        %v324 = vmul.f32 %v314, %v318
        %v325 = vmul.f32 %v315, %v318
        %v326 = vmul.f32 %v316, %v318
        %v327 = vstv %s308
        %v328 = vmul.f32 %v317, %v327
        %330 = vset.pattern.permute.xlu0 0
        %331 = vperm.xlu0 %330, %v319
        %v332 = vpop.permute.xlu0 %331
        %335 = vset.pattern.permute.xlu0 0
        %336 = vperm.xlu0 %335, %v320
        %v337 = vpop.permute.xlu0 %336
        %340 = vset.pattern.permute.xlu0 0
        %341 = vperm.xlu0 %340, %v321
        %v342 = vpop.permute.xlu0 %341
        %345 = vset.pattern.permute.xlu0 0
        %346 = vperm.xlu0 %345, %v322
        %v347 = vpop.permute.xlu0 %346
        %350 = vset.pattern.permute.xlu0 0
        %351 = vperm.xlu0 %350, %v323
        %v352 = vpop.permute.xlu0 %351
        %355 = vset.pattern.permute.xlu0 0
        %356 = vperm.xlu0 %355, %v324
        %v357 = vpop.permute.xlu0 %356
        %360 = vset.pattern.permute.xlu0 0
        %361 = vperm.xlu0 %360, %v325
        %v362 = vpop.permute.xlu0 %361
        %365 = vset.pattern.permute.xlu0 0
        %366 = vperm.xlu0 %365, %v326
        %v367 = vpop.permute.xlu0 %366
        %v370 = vperm.slane %v328, 0
        %v372 = vadd.f32 %v332, %v370
        %v373 = vadd.f32 %v337, %v370
        %v374 = vadd.f32 %v342, %v370
        %v375 = vadd.f32 %v347, %v370
        %v376 = vadd.f32 %v352, %v370
        %v377 = vadd.f32 %v357, %v370
        %v378 = vadd.f32 %v362, %v370
        %v379 = vadd.f32 %v367, %v370
        %v380 = vld [vmem:[%s249] sm:$0xf]
        %v381 = vld [vmem:[%s249 + $0x4] sm:$0xf]
        %v382 = vld [vmem:[%s249 + $0x8] sm:$0xf]
        %v383 = vld [vmem:[%s249 + $0xc] sm:$0xf]
        %v384 = vld [vmem:[%s249 + $0x10] sm:$0xf]
        %v385 = vld [vmem:[%s249 + $0x14] sm:$0xf]
        %v386 = vld [vmem:[%s249 + $0x18] sm:$0xf]
        %v387 = vld [vmem:[%s249 + $0x1c] sm:$0xf]
        %v388 = vunpack.c.l.bf16 %v380
        %v389 = vunpack.c.l.bf16 %v381
        %v390 = vunpack.c.l.bf16 %v382
        %v391 = vunpack.c.l.bf16 %v383
        %v392 = vunpack.c.l.bf16 %v384
        %v393 = vunpack.c.l.bf16 %v385
        %v394 = vunpack.c.l.bf16 %v386
        %v395 = vunpack.c.l.bf16 %v387
        %v396 = vmul.f32 %v388, %v372
        %v397 = vmul.f32 %v389, %v373
        %v398 = vmul.f32 %v390, %v374
        %v399 = vmul.f32 %v391, %v375
        %v400 = vmul.f32 %v392, %v376
        %v401 = vmul.f32 %v393, %v377
        %v402 = vmul.f32 %v394, %v378
        %v403 = vmul.f32 %v395, %v379
        %v404 = vld [vmem:[%s293] sm:$0xff]
        %v405 = vld [vmem:[%s293 + $0x8] sm:$0xff]
        %v406 = vld [vmem:[%s293 + $0x10] sm:$0xff]
        %v407 = vld [vmem:[%s293 + $0x18] sm:$0xff]
        %v408 = vld [vmem:[%s293 + $0x20] sm:$0xff]
        %v409 = vld [vmem:[%s293 + $0x28] sm:$0xff]
        %v410 = vld [vmem:[%s293 + $0x30] sm:$0xff]
        %v411 = vld [vmem:[%s293 + $0x38] sm:$0xff]
        %v412 = vadd.f32 %v396, %v404
        %v413 = vadd.f32 %v397, %v405
        %v414 = vadd.f32 %v398, %v406
        %v415 = vadd.f32 %v399, %v407
        %v416 = vadd.f32 %v400, %v408
        %v417 = vadd.f32 %v401, %v409
        %v418 = vadd.f32 %v402, %v410
        %v419 = vadd.f32 %v403, %v411
        %v420 = vmul.f32 %v412, 0.2
        %v421 = vmul.f32 %v413, 0.2
        %v422 = vmul.f32 %v414, 0.2
        %v423 = vmul.f32 %v415, 0.2
        %v424 = vmul.f32 %v416, 0.2
        %v425 = vmul.f32 %v417, 0.2
        %v426 = vmul.f32 %v418, 0.2
        %v427 = vmul.f32 %v419, 0.2
        %v428 = vmax.f32 %v412, %v420
        %v429 = vmax.f32 %v413, %v421
        %v430 = vmax.f32 %v414, %v422
        %v431 = vmax.f32 %v415, %v423
        %v432 = vmax.f32 %v416, %v424
        %v433 = vmax.f32 %v417, %v425
        %v434 = vmax.f32 %v418, %v426
        %v435 = vmax.f32 %v419, %v427
        %436 = vmax.xlane.f32.xlu0 %v428
        %v437 = vpop.xlane.xlu0 %436
        %438 = vmax.xlane.f32.xlu0 %v429
        %v439 = vpop.xlane.xlu0 %438
        %440 = vmax.xlane.f32.xlu0 %v430
        %v441 = vpop.xlane.xlu0 %440
        %442 = vmax.xlane.f32.xlu0 %v431
        %v443 = vpop.xlane.xlu0 %442
        %444 = vmax.xlane.f32.xlu0 %v432
        %v445 = vpop.xlane.xlu0 %444
        %446 = vmax.xlane.f32.xlu0 %v433
        %v447 = vpop.xlane.xlu0 %446
        %448 = vmax.xlane.f32.xlu0 %v434
        %v449 = vpop.xlane.xlu0 %448
        %450 = vmax.xlane.f32.xlu0 %v435
        %v451 = vpop.xlane.xlu0 %450
        %v452 = vsub.f32 %v428, %v437
        %v453 = vsub.f32 %v429, %v439
        %v454 = vsub.f32 %v430, %v441
        %v455 = vsub.f32 %v431, %v443
        %v456 = vsub.f32 %v432, %v445
        %v457 = vsub.f32 %v433, %v447
        %v458 = vsub.f32 %v434, %v449
        %v459 = vsub.f32 %v435, %v451
        %v460 = vmul.f32 %v452, 1.442695
        %v461 = vpow.pop %v460
        %v462 = vmul.f32 %v453, 1.442695
        %v463 = vpow.pop %v462
        %v464 = vmul.f32 %v454, 1.442695
        %v465 = vpow.pop %v464
        %v466 = vmul.f32 %v455, 1.442695
        %v467 = vpow.pop %v466
        %v468 = vmul.f32 %v456, 1.442695
        %v469 = vpow.pop %v468
        %v470 = vmul.f32 %v457, 1.442695
        %v471 = vpow.pop %v470
        %v472 = vmul.f32 %v458, 1.442695
        %v473 = vpow.pop %v472
        %v474 = vmul.f32 %v459, 1.442695
        %v475 = vpow.pop %v474
        %476 = vadd.xlane.f32.xlu0 %v461
        %v477 = vpop.xlane.xlu0 %476
        %478 = vadd.xlane.f32.xlu0 %v463
        %v479 = vpop.xlane.xlu0 %478
        %480 = vadd.xlane.f32.xlu0 %v465
        %v481 = vpop.xlane.xlu0 %480
        %482 = vadd.xlane.f32.xlu0 %v467
        %v483 = vpop.xlane.xlu0 %482
        %484 = vadd.xlane.f32.xlu0 %v469
        %v485 = vpop.xlane.xlu0 %484
        %486 = vadd.xlane.f32.xlu0 %v471
        %v487 = vpop.xlane.xlu0 %486
        %488 = vadd.xlane.f32.xlu0 %v473
        %v489 = vpop.xlane.xlu0 %488
        %490 = vadd.xlane.f32.xlu0 %v475
        %v491 = vpop.xlane.xlu0 %490
        %v492 = vrcp.pop %v477
        %v493 = vmul.f32 %v477, %v492
        %v494 = vsub.f32 1.0, %v493
        %v495 = vmul.f32 %v492, %v494
        %v496 = vadd.f32 %v492, %v495
        %vm497 = vweird.f32 %v477
        %vm498 = vweird.f32 %v492
        %vm499 = vmor %vm497, %vm498
        %v500 = vsel %vm499, %v492, %v496
        %v501 = vand.u32 2147483647, %v477
        %vm502 = vcmp.eq.f32.partialorder %v501, 8.507059e+37
        %v503 = vand.u32 %v477, 2147483648
        %v504 = vor.u32 1.1754944e-38, %v503
        %v505 = vsel %vm502, %v504, %v500
        %v506 = vrcp.pop %v479
        %v507 = vmul.f32 %v479, %v506
        %v508 = vsub.f32 1.0, %v507
        %v509 = vmul.f32 %v506, %v508
        %v510 = vadd.f32 %v506, %v509
        %vm511 = vweird.f32 %v479
        %vm512 = vweird.f32 %v506
        %vm513 = vmor %vm511, %vm512
        %v514 = vsel %vm513, %v506, %v510
        %v515 = vand.u32 2147483647, %v479
        %vm516 = vcmp.eq.f32.partialorder %v515, 8.507059e+37
        %v517 = vand.u32 %v479, 2147483648
        %v518 = vor.u32 1.1754944e-38, %v517
        %v519 = vsel %vm516, %v518, %v514
        %v520 = vrcp.pop %v481
        %v521 = vmul.f32 %v481, %v520
        %v522 = vsub.f32 1.0, %v521
        %v523 = vmul.f32 %v520, %v522
        %v524 = vadd.f32 %v520, %v523
        %vm525 = vweird.f32 %v481
        %vm526 = vweird.f32 %v520
        %vm527 = vmor %vm525, %vm526
        %v528 = vsel %vm527, %v520, %v524
        %v529 = vand.u32 2147483647, %v481
        %vm530 = vcmp.eq.f32.partialorder %v529, 8.507059e+37
        %v531 = vand.u32 %v481, 2147483648
        %v532 = vor.u32 1.1754944e-38, %v531
        %v533 = vsel %vm530, %v532, %v528
        %v534 = vrcp.pop %v483
        %v535 = vmul.f32 %v483, %v534
        %v536 = vsub.f32 1.0, %v535
        %v537 = vmul.f32 %v534, %v536
        %v538 = vadd.f32 %v534, %v537
        %vm539 = vweird.f32 %v483
        %vm540 = vweird.f32 %v534
        %vm541 = vmor %vm539, %vm540
        %v542 = vsel %vm541, %v534, %v538
        %v543 = vand.u32 2147483647, %v483
        %vm544 = vcmp.eq.f32.partialorder %v543, 8.507059e+37
        %v545 = vand.u32 %v483, 2147483648
        %v546 = vor.u32 1.1754944e-38, %v545
        %v547 = vsel %vm544, %v546, %v542
        %v548 = vrcp.pop %v485
        %v549 = vmul.f32 %v485, %v548
        %v550 = vsub.f32 1.0, %v549
        %v551 = vmul.f32 %v548, %v550
        %v552 = vadd.f32 %v548, %v551
        %vm553 = vweird.f32 %v485
        %vm554 = vweird.f32 %v548
        %vm555 = vmor %vm553, %vm554
        %v556 = vsel %vm555, %v548, %v552
        %v557 = vand.u32 2147483647, %v485
        %vm558 = vcmp.eq.f32.partialorder %v557, 8.507059e+37
        %v559 = vand.u32 %v485, 2147483648
        %v560 = vor.u32 1.1754944e-38, %v559
        %v561 = vsel %vm558, %v560, %v556
        %v562 = vrcp.pop %v487
        %v563 = vmul.f32 %v487, %v562
        %v564 = vsub.f32 1.0, %v563
        %v565 = vmul.f32 %v562, %v564
        %v566 = vadd.f32 %v562, %v565
        %vm567 = vweird.f32 %v487
        %vm568 = vweird.f32 %v562
        %vm569 = vmor %vm567, %vm568
        %v570 = vsel %vm569, %v562, %v566
        %v571 = vand.u32 2147483647, %v487
        %vm572 = vcmp.eq.f32.partialorder %v571, 8.507059e+37
        %v573 = vand.u32 %v487, 2147483648
        %v574 = vor.u32 1.1754944e-38, %v573
        %v575 = vsel %vm572, %v574, %v570
        %v576 = vrcp.pop %v489
        %v577 = vmul.f32 %v489, %v576
        %v578 = vsub.f32 1.0, %v577
        %v579 = vmul.f32 %v576, %v578
        %v580 = vadd.f32 %v576, %v579
        %vm581 = vweird.f32 %v489
        %vm582 = vweird.f32 %v576
        %vm583 = vmor %vm581, %vm582
        %v584 = vsel %vm583, %v576, %v580
        %v585 = vand.u32 2147483647, %v489
        %vm586 = vcmp.eq.f32.partialorder %v585, 8.507059e+37
        %v587 = vand.u32 %v489, 2147483648
        %v588 = vor.u32 1.1754944e-38, %v587
        %v589 = vsel %vm586, %v588, %v584
        %v590 = vrcp.pop %v491
        %v591 = vmul.f32 %v491, %v590
        %v592 = vsub.f32 1.0, %v591
        %v593 = vmul.f32 %v590, %v592
        %v594 = vadd.f32 %v590, %v593
        %vm595 = vweird.f32 %v491
        %vm596 = vweird.f32 %v590
        %vm597 = vmor %vm595, %vm596
        %v598 = vsel %vm597, %v590, %v594
        %v599 = vand.u32 2147483647, %v491
        %vm600 = vcmp.eq.f32.partialorder %v599, 8.507059e+37
        %v601 = vand.u32 %v491, 2147483648
        %v602 = vor.u32 1.1754944e-38, %v601
        %v603 = vsel %vm600, %v602, %v598
        %v604 = vmul.f32 %v461, %v505
        %v605 = vmul.f32 %v463, %v519
        %v606 = vmul.f32 %v465, %v533
        %v607 = vmul.f32 %v467, %v547
        %v608 = vmul.f32 %v469, %v561
        %v609 = vmul.f32 %v471, %v575
        %v610 = vmul.f32 %v473, %v589
        %v611 = vmul.f32 %v475, %v603
        %v613 = vperm.slane %v317, 0
        %v615 = vmul.f32 %v604, %v613
        %v616 = vmul.f32 %v605, %v613
        %v617 = vmul.f32 %v606, %v613
        %v618 = vmul.f32 %v607, %v613
        %v619 = vmul.f32 %v608, %v613
        %v620 = vmul.f32 %v609, %v613
        %v621 = vmul.f32 %v610, %v613
        %v622 = vmul.f32 %v611, %v613
        %623 = vadd.xlane.f32.xlu0 %v615
        %v624 = vpop.xlane.xlu0 %623
        %625 = vadd.xlane.f32.xlu0 %v616
        %v626 = vpop.xlane.xlu0 %625
        %627 = vadd.xlane.f32.xlu0 %v617
        %v628 = vpop.xlane.xlu0 %627
        %629 = vadd.xlane.f32.xlu0 %v618
        %v630 = vpop.xlane.xlu0 %629
        %631 = vadd.xlane.f32.xlu0 %v619
        %v632 = vpop.xlane.xlu0 %631
        %633 = vadd.xlane.f32.xlu0 %v620
        %v634 = vpop.xlane.xlu0 %633
        %635 = vadd.xlane.f32.xlu0 %v621
        %v636 = vpop.xlane.xlu0 %635
        %637 = vadd.xlane.f32.xlu0 %v622
        %v638 = vpop.xlane.xlu0 %637
        %vm639 = vcmask 7168
        %640 = vst.msk [vmem:[%s305] sm:$0xff] %vm639, %v624
        %641 = vst.msk [vmem:[%s305 + $0x8] sm:$0xff] %vm639, %v626
        %642 = vst.msk [vmem:[%s305 + $0x10] sm:$0xff] %vm639, %v628
        %643 = vst.msk [vmem:[%s305 + $0x18] sm:$0xff] %vm639, %v630
        %644 = vst.msk [vmem:[%s305 + $0x20] sm:$0xff] %vm639, %v632
        %645 = vst.msk [vmem:[%s305 + $0x28] sm:$0xff] %vm639, %v634
        %646 = vst.msk [vmem:[%s305 + $0x30] sm:$0xff] %vm639, %v636
        %647 = vst.msk [vmem:[%s305 + $0x38] sm:$0xff] %vm639, %v638
        %s648 = smul.u32 8, %s20
        %p649 = scmp.lt.s32.totalorder %s648, 15
        %s650 = scalar_select %p649, %s648, 15
        %s651 = smul.addr %s650, 8
        %s652 = scalar_lea.vmem %s5, %s651
        // Predicated region
        $region49: #{tpu_custom_call.1} parent=39 // pred_check
          %p653 = pneg %p158
        $region50: #{tpu_custom_call.1} parent=39 // pred_check_branch
          %655 = sbr.rel (%p653) target = $region52
        $region51: #{tpu_custom_call.1} parent=39 // pred_region
          %s656 = smul.u32 8, %s20
        $region52: #{tpu_custom_call.1} parent=39 // pred_fallthru
          _
      $region40: #{tpu_custom_call.1} parent=5 // pred_fallthru
        _
      %p657 = scmp.le.s32.totalorder 2, %s15
      // Predicated region
      $region53: #{tpu_custom_call.1} parent=5 // pred_check
        %p658 = pneg %p657
      $region54: #{tpu_custom_call.1} parent=5 // pred_check_branch
        %660 = sbr.rel (%p658) target = $region56
      $region55: #{tpu_custom_call.1} parent=5 // pred_region
        %s661 = ssub.s32 %s15, 2
        // Predicated region
        $region57: #{tpu_custom_call.1} parent=55 // pred_check
          %p662 = pneg %p164
        $region58: #{tpu_custom_call.1} parent=55 // pred_check_branch
          %664 = sbr.rel (%p662) target = $region60
        $region59: #{tpu_custom_call.1} parent=55 // pred_region
          %s665 = smul.u32 8, %s21
          %p666 = scmp.lt.s32.totalorder %s665, 15
          %s667 = scalar_select %p666, %s665, 15
          %s668 = smul.addr %s667, 8
          %s669 = scalar_lea.vmem %s5, %s668
        $region60: #{tpu_custom_call.1} parent=55 // pred_fallthru
          _
      $region56: #{tpu_custom_call.1} parent=5 // pred_fallthru
        _
    $region6: #{tpu_custom_call.1} parent=1 // loop_footer
      %s19 = sadd.s32 1, %s15
    $region7: #{tpu_custom_call.1} parent=1 // loop_footer_branch
      %14 = sbr.rel target = $region3
    $region8: #{tpu_custom_call.1} parent=1 // loop_exit
      _
    %670 = vsyncpa [#allocation3], 1
    %s671 = scalar_lea.sflag [#allocation3], 1
    %672 = vsyncpa %s671, 1
    %673 = vsyncpa [#allocation4], 1
    %s674 = scalar_lea.sflag [#allocation4], 1
    %675 = vsyncpa %s674, 1

</llo_original>
